<compile_context>
chip_gen: v7x
topology: tpu7x:2x2x1
jax: 0.10.0
libtpu: 0.0.40
codegen_flags: <defaults>
</compile_context>

<pallas_src>
import functools

import jax
import jax.numpy as jnp
from jax import lax
from jax.experimental import pallas as pl
from jax.experimental.pallas import tpu as pltpu


def _round_up(x, m):
    return (x + m - 1) // m * m


def _vmem_limit_bytes(requested):
    """Per-generation scoped-VMEM cap: ~75% of physical, conservative fallback."""
    cap = 48 * 1024 * 1024  # safe everywhere (v7x physical is 64 MiB / TC)
    try:
        cap = min(96 * 1024 * 1024,
                  int(pltpu.get_tpu_info().vmem_capacity_bytes) * 3 // 4)
    except Exception:
        pass
    return int(min(max(requested, 32 * 1024 * 1024), cap))


def bow_kernel(x_ref, w_ref, b_ref, o_ref, acc_ref, *, tk, vp, rem_v):
    # x_ref:   [tb, tk]   streamed counts tile (stream dtype)
    # w_ref:   [L, vp]    VMEM-resident weight (native [L, V] layout, padded)
    # b_ref:   [1, L]     bias (f32)
    # o_ref:   [tb, L]    log-probs (f32), written once per batch tile
    # acc_ref: [tb, L]    f32 accumulator, persists across the V-reduction axis
    k = pl.program_id(1)
    nk = pl.num_programs(1)

    @pl.when(k == 0)
    def _init():
        acc_ref[...] = jnp.zeros_like(acc_ref)

    x = x_ref[...]
    if rem_v != tk:
        # Ragged last V tile: the tail columns of the streamed x block are
        # undefined (no wrapper padding) -> zero them before the dot.
        valid = jnp.where(k == nk - 1, rem_v, tk)
        col = lax.broadcasted_iota(jnp.int32, x.shape, 1)
        x = jnp.where(col < valid, x, jnp.zeros_like(x))

    if vp == tk:
        w = w_ref[...]                                   # single V tile
    else:
        start = pl.multiple_of(k * tk, 128)              # lane-aligned chunk
        w = w_ref[:, pl.ds(start, tk)]                   # [L, tk]

    # Contract both operands over V (their lane axis) on the MXU; f32 accumulate.
    acc_ref[...] += lax.dot_general(
        x, w,
        dimension_numbers=(((1,), (1,)), ((), ())),
        preferred_element_type=jnp.float32,
    )

    @pl.when(k == nk - 1)
    def _epilogue():
        logits = acc_ref[...] + b_ref[...]                 # bias fold
        m = jnp.max(logits, axis=1, keepdims=True)         # stable log_softmax
        shifted = logits - m
        lse = jnp.log(jnp.sum(jnp.exp(shifted), axis=1, keepdims=True))
        o_ref[...] = (shifted - lse).astype(o_ref.dtype)


def bow_classifier(bow_vec, weight, bias, *, tb=None, tk=None,
                   stream_dtype=jnp.bfloat16):
    """Forward pass of BoWClassifier.

    bow_vec: [B, V] counts; weight: [L, V] (native nn.Linear layout); bias: [L].
    Returns [B, L] log-probabilities (float32).
    """
    B, V = bow_vec.shape
    L, Vw = weight.shape
    assert Vw == V and bias.shape == (L,)

    itemsize = jnp.dtype(stream_dtype).itemsize

    # ---- tile selection -----------------------------------------------------
    if tk is None:
        tk = 8192 if itemsize <= 2 else 4096
    if V <= tk:
        tk = V                                   # single full-extent V block
    else:
        tk = max(128, (tk // 128) * 128)         # lane-aligned streaming tile

    if tb is None:
        tb = 512
    if B <= 8:
        tb = B                                   # full-extent batch block
    else:
        # >= ~4 batch tiles when possible so the "parallel" axis shards across
        # both TensorCores on v7x; multiple of 8 for sublane tiling.
        tb = min(tb, max(8, _round_up(pl.cdiv(B, 4), 8)))

    ni = pl.cdiv(B, tb)
    nk = pl.cdiv(V, tk)
    Vp = nk * tk
    rem_v = V - (nk - 1) * tk                    # width of last (ragged) V tile

    # ---- operands: x streamed as-is (no big pad/copy); the tiny weight is
    # cast + padded so it can sit fully resident in VMEM; bias stays f32. -----
    x = bow_vec.astype(stream_dtype)             # no-op if already stream_dtype
    w = weight.astype(stream_dtype)
    if Vp != V:
        w = jnp.pad(w, ((0, 0), (0, Vp - V)))    # tiny [L, V]-sized copy only
    b2 = bias.reshape(1, L).astype(jnp.float32)

    vmem_est = (2 * tb * tk * itemsize           # double-buffered x stream
                + 2 * L * Vp * itemsize          # resident weight (worst case)
                + 2 * tb * L * 4 + tb * L * 4    # output buffers + accumulator
                + 4 * 1024 * 1024)               # headroom

    kernel = functools.partial(bow_kernel, tk=tk, vp=Vp, rem_v=rem_v)

    out = pl.pallas_call(
        kernel,
        out_shape=jax.ShapeDtypeStruct((B, L), jnp.float32),
        grid_spec=pltpu.PrefetchScalarGridSpec(
            num_scalar_prefetch=0,
            grid=(ni, nk),
            in_specs=[
                pl.BlockSpec((tb, tk), lambda i, k: (i, k)),   # x: streamed
                pl.BlockSpec((L, Vp), lambda i, k: (0, 0)),    # w: VMEM-resident
                pl.BlockSpec((1, L), lambda i, k: (0, 0)),     # bias
            ],
            out_specs=pl.BlockSpec((tb, L), lambda i, k: (i, 0)),
            scratch_shapes=[pltpu.VMEM((tb, L), jnp.float32)],
        ),
        compiler_params=pltpu.CompilerParams(
            # batch axis parallel (megacore on v7x), V reduction arbitrary + last
            dimension_semantics=("parallel", "arbitrary"),
            vmem_limit_bytes=_vmem_limit_bytes(vmem_est),
        ),
    )(x, w, b2)

    return out


def _reference(bow_vec, weight, bias, dtype=jnp.float32):
    x = bow_vec.astype(dtype).astype(jnp.float32)
    w = weight.astype(dtype).astype(jnp.float32)
    logits = x @ w.T + bias
    return jax.nn.log_softmax(logits, axis=1)


if __name__ == "__main__":
    NUM_LABELS = 4

    # ---- Test 1: module-consistent toy shapes, exact f32 path ---------------
    VOCAB_SIZE, BATCH = 32, 2
    key = jax.random.PRNGKey(0)
    k_x, k_w, k_b = jax.random.split(key, 3)
    bound = 1.0 / jnp.sqrt(jnp.float32(VOCAB_SIZE))
    weight = jax.random.uniform(k_w, (NUM_LABELS, VOCAB_SIZE),
                                minval=-bound, maxval=bound, dtype=jnp.float32)
    bias = jax.random.uniform(k_b, (NUM_LABELS,),
                              minval=-bound, maxval=bound, dtype=jnp.float32)
    bow_vec = jax.random.randint(k_x, (BATCH, VOCAB_SIZE), 0, 4).astype(jnp.float32)

    out = jax.block_until_ready(
        bow_classifier(bow_vec, weight, bias, stream_dtype=jnp.float32))
    assert out.shape == (BATCH, NUM_LABELS)
    assert jnp.allclose(out, _reference(bow_vec, weight, bias),
                        atol=1e-4, rtol=1e-4)

    # ---- Test 2: tiled accumulating path (even division), bf16 streaming ----
    B2, V2 = 16, 1024
    k_x2, k_w2, k_b2 = jax.random.split(jax.random.PRNGKey(1), 3)
    bound2 = 1.0 / jnp.sqrt(jnp.float32(V2))
    w2 = jax.random.uniform(k_w2, (NUM_LABELS, V2),
                            minval=-bound2, maxval=bound2, dtype=jnp.float32)
    b2 = jax.random.uniform(k_b2, (NUM_LABELS,),
                            minval=-bound2, maxval=bound2, dtype=jnp.float32)
    x2 = jax.random.randint(k_x2, (B2, V2), 0, 4).astype(jnp.float32)
    out2 = jax.block_until_ready(bow_classifier(x2, w2, b2, tb=8, tk=256))
    assert out2.shape == (B2, NUM_LABELS)
    assert jnp.allclose(out2, _reference(x2, w2, b2, dtype=jnp.bfloat16),
                        atol=1e-3, rtol=1e-3)
    assert jnp.allclose(out2, _reference(x2, w2, b2), atol=3e-2, rtol=3e-2)

    # ---- Test 3: ragged B and V (no wrapper padding; in-kernel tail mask) ---
    B3, V3 = 18, 1000
    k_x3, k_w3, k_b3 = jax.random.split(jax.random.PRNGKey(2), 3)
    bound3 = 1.0 / jnp.sqrt(jnp.float32(V3))
    w3 = jax.random.uniform(k_w3, (NUM_LABELS, V3),
                            minval=-bound3, maxval=bound3, dtype=jnp.float32)
    b3 = jax.random.uniform(k_b3, (NUM_LABELS,),
                            minval=-bound3, maxval=bound3, dtype=jnp.float32)
    x3 = jax.random.randint(k_x3, (B3, V3), 0, 4).astype(jnp.float32)
    out3 = jax.block_until_ready(bow_classifier(x3, w3, b3, tb=8, tk=256))
    assert out3.shape == (B3, NUM_LABELS)
    assert jnp.allclose(out3, _reference(x3, w3, b3, dtype=jnp.bfloat16),
                        atol=1e-3, rtol=1e-3)
    assert jnp.allclose(out3, _reference(x3, w3, b3), atol=3e-2, rtol=3e-2)

    print("KERNEL_OK")
</pallas_src>

<mosaic_0001>
module attributes {stable_mosaic.version = 11 : i64} {
  func.func @bow_kernel(%arg0: i32, %arg1: i32, %arg2: memref<2x32xf32, #tpu.memory_space<vmem>>, %arg3: memref<4x32xf32, #tpu.memory_space<vmem>>, %arg4: memref<1x4xf32, #tpu.memory_space<vmem>>, %arg5: memref<2x4xf32, #tpu.memory_space<vmem>>, %arg6: memref<2x4xf32, #tpu.memory_space<vmem>>) attributes {dimension_semantics = [#tpu.dimension_semantics<parallel>, #tpu.dimension_semantics<arbitrary>], iteration_bounds = array<i64: 1, 1>, scalar_prefetch = 0 : i64, scratch_operands = 1 : i64, tpu.core_type = #tpu.core_type<tc>, window_params = [{transform_indices = @transform_0, window_bounds = array<i64: 2, 32>}, {pipeline_mode = #tpu.pipeline_mode<synchronous>, transform_indices = @transform_1, window_bounds = array<i64: 4, 32>}, {pipeline_mode = #tpu.pipeline_mode<synchronous>, transform_indices = @transform_2, window_bounds = array<i64: 1, 4>}, {transform_indices = @transform_3, window_bounds = array<i64: 2, 4>}]} {
    %c0_i32 = arith.constant 0 : i32
    %0 = arith.cmpi eq, %arg1, %c0_i32 : i32
    %1 = arith.extui %0 : i1 to i32
    %c0_i32_0 = arith.constant 0 : i32
    %2 = arith.cmpi ne, %1, %c0_i32_0 : i32
    scf.if %2 {
      %cst_10 = arith.constant 0.000000e+00 : f32
      %12 = vector.broadcast %cst_10 : f32 to vector<2x4xf32>
      %c0_11 = arith.constant 0 : index
      %c0_12 = arith.constant 0 : index
      %13 = vector.load %arg6[%c0_11, %c0_12] : memref<2x4xf32, #tpu.memory_space<vmem>>, vector<2x4xf32>
      tpu.vector_store %arg6[%c0_11, %c0_12], %12 {strides = array<i32>} : memref<2x4xf32, #tpu.memory_space<vmem>>, vector<2x4xf32>,
    } else {
    }
    %c0 = arith.constant 0 : index
    %c0_1 = arith.constant 0 : index
    %3 = vector.load %arg2[%c0, %c0_1] : memref<2x32xf32, #tpu.memory_space<vmem>>, vector<2x32xf32>
    %c0_2 = arith.constant 0 : index
    %c0_3 = arith.constant 0 : index
    %4 = vector.load %arg3[%c0_2, %c0_3] : memref<4x32xf32, #tpu.memory_space<vmem>>, vector<4x32xf32>
    %c0_4 = arith.constant 0 : index
    %c0_5 = arith.constant 0 : index
    %5 = vector.load %arg6[%c0_4, %c0_5] : memref<2x4xf32, #tpu.memory_space<vmem>>, vector<2x4xf32>
    %cst = arith.constant dense<0.000000e+00> : vector<2x4xf32>
    %6 = tpu.matmul %3, %4, %cst {dimension_numbers = #tpu.dot_dimension_numbers<[1], [1], [0], [0], [0, 0, 1, 0], [], []>} : vector<2x32xf32>, vector<4x32xf32>, vector<2x4xf32> -> vector<2x4xf32>
    %7 = arith.addf %5, %6 : vector<2x4xf32>
    %c0_6 = arith.constant 0 : index
    %c0_7 = arith.constant 0 : index
    %8 = vector.load %arg6[%c0_6, %c0_7] : memref<2x4xf32, #tpu.memory_space<vmem>>, vector<2x4xf32>
    tpu.vector_store %arg6[%c0_6, %c0_7], %7 {strides = array<i32>} : memref<2x4xf32, #tpu.memory_space<vmem>>, vector<2x4xf32>,
    %c0_i32_8 = arith.constant 0 : i32
    %9 = arith.cmpi eq, %arg1, %c0_i32_8 : i32
    %10 = arith.extui %9 : i1 to i32
    %c0_i32_9 = arith.constant 0 : i32
    %11 = arith.cmpi ne, %10, %c0_i32_9 : i32
    scf.if %11 {
      %c0_10 = arith.constant 0 : index
      %c0_11 = arith.constant 0 : index
      %12 = vector.load %arg6[%c0_10, %c0_11] : memref<2x4xf32, #tpu.memory_space<vmem>>, vector<2x4xf32>
      %c0_12 = arith.constant 0 : index
      %c0_13 = arith.constant 0 : index
      %13 = vector.load %arg4[%c0_12, %c0_13] : memref<1x4xf32, #tpu.memory_space<vmem>>, vector<1x4xf32>
      %14 = vector.broadcast %13 : vector<1x4xf32> to vector<2x4xf32>
      %15 = arith.addf %12, %14 : vector<2x4xf32>
      %cst_14 = arith.constant dense<0xFF800000> : vector<2xf32>
      %16 = vector.multi_reduction <maximumf>, %15, %cst_14 [1] : vector<2x4xf32> to vector<2xf32>
      %17 = vector.shape_cast %16 : vector<2xf32> to vector<2x1xf32>
      %18 = vector.broadcast %17 : vector<2x1xf32> to vector<2x4xf32>
      %19 = arith.subf %15, %18 : vector<2x4xf32>
      %20 = math.exp %19 : vector<2x4xf32>
      %cst_15 = arith.constant dense<0.000000e+00> : vector<2xf32>
      %21 = vector.multi_reduction <add>, %20, %cst_15 [1] : vector<2x4xf32> to vector<2xf32>
      %22 = vector.shape_cast %21 : vector<2xf32> to vector<2x1xf32>
      %23 = math.log %22 : vector<2x1xf32>
      %24 = vector.broadcast %23 : vector<2x1xf32> to vector<2x4xf32>
      %25 = arith.subf %19, %24 : vector<2x4xf32>
      %c0_16 = arith.constant 0 : index
      %c0_17 = arith.constant 0 : index
      %26 = vector.load %arg5[%c0_16, %c0_17] : memref<2x4xf32, #tpu.memory_space<vmem>>, vector<2x4xf32>
      tpu.vector_store %arg5[%c0_16, %c0_17], %25 {strides = array<i32>} : memref<2x4xf32, #tpu.memory_space<vmem>>, vector<2x4xf32>,
    } else {
    }
    return
  }
  func.func @transform_0(%arg0: i32, %arg1: i32) -> (i32, i32) {
    %c0_i32 = arith.constant 0 : i32
    return %arg0, %arg1 : i32, i32
  }
  func.func @transform_1(%arg0: i32, %arg1: i32) -> (i32, i32) {
    %c0_i32 = arith.constant 0 : i32
    %c0_i32_0 = arith.constant 0 : i32
    %c0_i32_1 = arith.constant 0 : i32
    return %c0_i32, %c0_i32_0 : i32, i32
  }
  func.func @transform_2(%arg0: i32, %arg1: i32) -> (i32, i32) {
    %c0_i32 = arith.constant 0 : i32
    %c0_i32_0 = arith.constant 0 : i32
    %c0_i32_1 = arith.constant 0 : i32
    return %c0_i32, %c0_i32_0 : i32, i32
  }
  func.func @transform_3(%arg0: i32, %arg1: i32) -> (i32, i32) {
    %c0_i32 = arith.constant 0 : i32
    %c0_i32_0 = arith.constant 0 : i32
    return %arg0, %c0_i32 : i32, i32
  }
}

</mosaic_0001>

<llo_original>
// kernel: tpu_custom_call.1
$region0: #{tpu_custom_call.1}
  #allocation0 [shape = 'u32[]', space=smem, size = 0x4, offset = 0x4, fixed_abs, tag = 'smem constant byte address 0x4 - core index']
  #allocation1 [shape = 'u32[144,128]{1,0:T(1,128)}', space=vmem, size = 0x12000, scoped, tag = 'internal scratch']
  #allocation2 [shape = 'f32[2,4]{1,0:T(2,128)}', space=vmem, size = 0x400, scoped, tag = 'scratch operand']
  %s0 = inlined_call_operand.hbm [shape: f32[2,32], index: 0, kind: input, shape index: {}]
  %s1 = inlined_call_operand.hbm [shape: f32[4,32], index: 1, kind: input, shape index: {}]
  %s2 = inlined_call_operand.vmem [shape: f32[1,4], index: 2, kind: input, shape index: {}]
  %s3 = inlined_call_operand.hbm [shape: f32[2,4], index: 3, kind: output, shape index: {}]
  %s4 = sld [smem:[#allocation0]]
  $region38: #{tpu_custom_call.1} parent=0
    _
  %s6 = ssub.s32 1, %s4
  %s7 = scalar_select 0, %s6, %s4
  $region1: #{tpu_custom_call.1} parent=0
    #allocation3 [shape = 'u8[1024]{0}', space=vmem, size = 0x400, scoped, tag = 'input window, operand 0, single buffered']
    #allocation4 [shape = 's32[1]{0}', space=sflag, size = 0x4, scoped, tag = 'scoped memory for tpu_custom_call.1']
    #allocation5 [shape = 's32[1]{0}', space=sflag, size = 0x4, scoped, tag = 'scoped memory for tpu_custom_call.1']
    #allocation6 [shape = 'u8[2048]{0}', space=vmem, size = 0x800, scoped, tag = 'input window, operand 1, single buffered']
    #allocation7 [shape = 's32[1]{0}', space=sflag, size = 0x4, scoped, tag = 'scoped memory for tpu_custom_call.1']
    #allocation8 [shape = 'u8[1024]{0}', space=vmem, size = 0x400, scoped, tag = 'output window, operand 0, single buffered']
    %8 = vsyncpa [#allocation4], 0
    %9 = vsyncpa [#allocation7], 0
    %10 = vsyncpa [#allocation5], 0
    // Predicated region
    $region2: #{tpu_custom_call.1} parent=1 // pred_check
      _
    $region3: #{tpu_custom_call.1} parent=1 // pred_check_branch
      %12 = sbr.rel (0) target = $region5
    $region4: #{tpu_custom_call.1} parent=1 // pred_region
      %s14 = ssub.s32 32, 32
      %15 = vsyncadd [#allocation4], %s14
      %s17 = sshll.u32 [#allocation3], 4
      %s18 = int_to_ptr.vmem [resolvable:$true] %s17
      %20 = dma.hbm_to_vmem [thread:$0]  %s0, 32, %s18, [#allocation4]
    $region5: #{tpu_custom_call.1} parent=1 // pred_fallthru
      _
    // Predicated region
    $region6: #{tpu_custom_call.1} parent=1 // pred_check
      _
    $region7: #{tpu_custom_call.1} parent=1 // pred_check_branch
      %22 = sbr.rel (0) target = $region9
    $region8: #{tpu_custom_call.1} parent=1 // pred_region
      %s24 = ssub.s32 64, 64
      %25 = vsyncadd [#allocation7], %s24
      %s27 = sshll.u32 [#allocation6], 4
      %s28 = int_to_ptr.vmem [resolvable:$true] %s27
      %30 = dma.hbm_to_vmem [thread:$0]  %s1, 64, %s28, [#allocation7]
    $region9: #{tpu_custom_call.1} parent=1 // pred_fallthru
      _
    // Predicated region
    $region10: #{tpu_custom_call.1} parent=1 // pred_check
      _
    $region11: #{tpu_custom_call.1} parent=1 // pred_check_branch
      %32 = sbr.rel (0) target = $region13
    $region12: #{tpu_custom_call.1} parent=1 // pred_region
      _
    $region13: #{tpu_custom_call.1} parent=1 // pred_fallthru
      _
    // Predicated region
    $region14: #{tpu_custom_call.1} parent=1 // pred_check
      _
    $region15: #{tpu_custom_call.1} parent=1 // pred_check_branch
      %34 = sbr.rel (0) target = $region17
    $region16: #{tpu_custom_call.1} parent=1 // pred_region
      %35 = dma.done [#allocation4], 32
    $region17: #{tpu_custom_call.1} parent=1 // pred_fallthru
      _
    // Predicated region
    $region18: #{tpu_custom_call.1} parent=1 // pred_check
      _
    $region19: #{tpu_custom_call.1} parent=1 // pred_check_branch
      %37 = sbr.rel (0) target = $region21
    $region20: #{tpu_custom_call.1} parent=1 // pred_region
      %38 = dma.done [#allocation7], 64
    $region21: #{tpu_custom_call.1} parent=1 // pred_fallthru
      _
    %p39 = scmp.eq.s32.totalorder 0, 0
    // Predicated region
    $region22: #{tpu_custom_call.1} parent=1 // pred_check
      %p40 = pneg %p39
    $region23: #{tpu_custom_call.1} parent=1 // pred_check_branch
      %42 = sbr.rel (%p40) target = $region25
    $region24: #{tpu_custom_call.1} parent=1 // pred_region
      %vm43 = vcmask 25600
      %44 = vst.msk [vmem:[#allocation2] sm:$0x3] %vm43, 0.0
    $region25: #{tpu_custom_call.1} parent=1 // pred_fallthru
      _
    %v45 = vld [vmem:[#allocation3] sm:$0x3]
    %v46 = vld [vmem:[#allocation6] sm:$0xf]
    %v47 = vld [vmem:[#allocation2] sm:$0x3]
    %vm48 = vcmask 261120
    %v50 = vsel %vm48, %v45, 0
    %v53 = vsel %vm48, %v46, 0
    %55 = vmatprep.subr.mxu0 0.0
    %56 = vmatpush1.xpose.msra.mxu0 %v53
    %57 = vmatprep.subr.mxu0 0.0
    %58 = vmatpush1.xpose.msra.mxu0 0.0
    %59 = vmatprep.subr.mxu0 0.0
    %60 = vmatpush1.xpose.msra.mxu0 0.0
    %61 = vmatprep.subr.mxu0 0.0
    %62 = vmatpush1.xpose.msra.mxu0 0.0
    %63 = vmatprep.subr.mxu0 0.0
    %64 = vmatpush1.xpose.msra.mxu0 0.0
    %65 = vmatprep.subr.mxu0 0.0
    %66 = vmatpush1.xpose.msra.mxu0 0.0
    %67 = vmatprep.subr.mxu0 0.0
    %68 = vmatpush1.xpose.msra.mxu0 0.0
    %69 = vmatprep.subr.mxu0 0.0
    %70 = vmatpush1.xpose.msra.mxu0 0.0
    %71 = vmatprep.subr.mxu0 0.0
    %72 = vmatpush1.xpose.msra.mxu0 0.0
    %73 = vmatprep.subr.mxu0 0.0
    %74 = vmatpush1.xpose.msra.mxu0 0.0
    %75 = vmatprep.subr.mxu0 0.0
    %76 = vmatpush1.xpose.msra.mxu0 0.0
    %77 = vmatprep.subr.mxu0 0.0
    %78 = vmatpush1.xpose.msra.mxu0 0.0
    %79 = vmatprep.subr.mxu0 0.0
    %80 = vmatpush1.xpose.msra.mxu0 0.0
    %81 = vmatprep.subr.mxu0 0.0
    %82 = vmatpush1.xpose.msra.mxu0 0.0
    %83 = vmatprep.subr.mxu0 0.0
    %84 = vmatpush1.xpose.msra.mxu0 0.0
    %85 = vmatprep.subr.mxu0 0.0
    %86 = vmatpush1.xpose.msra.mxu0 0.0
    %87 = vmatprep.subr.mxu0 0.0
    %88 = vmatpush1.xpose.msra.mxu0 0.0
    %89 = vmatprep.subr.mxu0 0.0
    %90 = vmatpush1.xpose.msra.mxu0 0.0
    %91 = vmatprep.subr.mxu0 0.0
    %92 = vmatpush1.xpose.msra.mxu0 0.0
    %93 = vmatprep.subr.mxu0 0.0
    %94 = vmatpush1.xpose.msra.mxu0 0.0
    %95 = vmatprep.subr.mxu0 0.0
    %96 = vmatpush1.xpose.msra.mxu0 0.0
    %97 = vmatprep.subr.mxu0 0.0
    %98 = vmatpush1.xpose.msra.mxu0 0.0
    %99 = vmatprep.subr.mxu0 0.0
    %100 = vmatpush1.xpose.msra.mxu0 0.0
    %101 = vmatprep.subr.mxu0 0.0
    %102 = vmatpush1.xpose.msra.mxu0 0.0
    %103 = vmatprep.subr.mxu0 0.0
    %104 = vmatpush1.xpose.msra.mxu0 0.0
    %105 = vmatprep.subr.mxu0 0.0
    %106 = vmatpush1.xpose.msra.mxu0 0.0
    %107 = vmatprep.subr.mxu0 0.0
    %108 = vmatpush1.xpose.msra.mxu0 0.0
    %109 = vmatprep.subr.mxu0 0.0
    %110 = vmatpush1.xpose.msra.mxu0 0.0
    %111 = vmatprep.subr.mxu0 0.0
    %112 = vmatpush1.xpose.msra.mxu0 0.0
    %113 = vmatprep.subr.mxu0 0.0
    %114 = vmatpush1.xpose.msra.mxu0 0.0
    %115 = vmatprep.subr.mxu0 0.0
    %116 = vmatpush1.xpose.msra.mxu0 0.0
    %117 = vmatprep.subr.mxu0 0.0
    %118 = vmatpush1.xpose.msra.mxu0 0.0
    %119 = vmatprep.mubr.f32.mxu0 0.0
    %120 = vmatmul.mubr.f32.gmra.mrb[0].mxu0 %v50
    %v121 = vpop.f32.mrb[0].mxu0
    %v122 = vadd.f32 0.0, %v121
    %v123 = vpop.f32.mrb[0].mxu0
    %124 = vdwg.mxu0
    %v125 = vadd.f32 %v47, %v122
    %vm126 = vcmask 25600
    %127 = vst.msk [vmem:[#allocation2] sm:$0x3] %vm126, %v125
    // Predicated region
    $region26: #{tpu_custom_call.1} parent=1 // pred_check
      %p128 = pneg %p39
    $region27: #{tpu_custom_call.1} parent=1 // pred_check_branch
      %130 = sbr.rel (%p128) target = $region29
    $region28: #{tpu_custom_call.1} parent=1 // pred_region
      %v131 = vld [vmem:[#allocation2] sm:$0x3]
      %v132 = vld [vmem:[%s2] sm:$0x1]
      %v134 = vlaneseq
      %v135 = vshrl.u32 %v134, 7
      %v136 = vsub.s32 0, %v135
      %v137 = vrot.slane %v132, %v136
      %v139 = vadd.f32 %v131, %v137
      %v140 = vsel %vm126, %v139, -inf
      %141 = vmax.xlane.f32.xlu0 %v140
      %v142 = vpop.xlane.xlu0 %141
      %v143 = vsub.f32 %v139, %v142
      %v144 = vmul.f32 %v143, 1.442695
      %v145 = vpow.pop %v144
      %v146 = vsel %vm126, %v145, 0.0
      %147 = vadd.xlane.f32.xlu0 %v146
      %v148 = vpop.xlane.xlu0 %147
      %v149 = vlog2.pop %v148
      %v150 = vmul.f32 %v149, 0.6931472
      %v151 = vsub.f32 %v143, %v150
      %152 = vst.msk [vmem:[#allocation8] sm:$0x3] %vm126, %v151
    $region29: #{tpu_custom_call.1} parent=1 // pred_fallthru
      _
    // Predicated region
    $region30: #{tpu_custom_call.1} parent=1 // pred_check
      _
    $region31: #{tpu_custom_call.1} parent=1 // pred_check_branch
      %154 = sbr.rel (0) target = $region33
    $region32: #{tpu_custom_call.1} parent=1 // pred_region
      %s156 = ssub.s32 32, 32
      %157 = vsyncadd [#allocation5], %s156
      %s159 = sshll.u32 [#allocation8], 4
      %s160 = int_to_ptr.vmem [resolvable:$true] %s159
      %162 = dma.vmem_to_hbm [thread:$0]  %s160, 32, %s3, [#allocation5]
    $region33: #{tpu_custom_call.1} parent=1 // pred_fallthru
      _
    // Predicated region
    $region34: #{tpu_custom_call.1} parent=1 // pred_check
      _
    $region35: #{tpu_custom_call.1} parent=1 // pred_check_branch
      %164 = sbr.rel (0) target = $region37
    $region36: #{tpu_custom_call.1} parent=1 // pred_region
      %165 = dma.done [#allocation5], 32
    $region37: #{tpu_custom_call.1} parent=1 // pred_fallthru
      _
    %166 = vsyncpa [#allocation4], 1
    %167 = vsyncpa [#allocation7], 1
    %168 = vsyncpa [#allocation5], 1

</llo_original>
